<compile_context>
chip_gen: v5e
topology: v5e:2x2
jax: 0.10.0
libtpu: 0.0.40
codegen_flags: <defaults>
</compile_context>

<pallas_src>
import math
import numpy as np
import jax
import jax.numpy as jnp
from jax.experimental import pallas as pl
from jax.experimental.pallas import tpu as pltpu


# ------------------------------------------------------------------------- #
# Small host-side helpers
# ------------------------------------------------------------------------- #
def _cdiv(a, b):
    return -(-a // b)


def _round_up(x, m):
    return _cdiv(x, m) * m


def _vmem_budget_bytes():
    """Per-generation scoped-VMEM limit and double-buffered tile budget."""
    try:
        cap = int(pltpu.get_tpu_info().vmem_capacity_bytes)
    except Exception:
        cap = 64 << 20                                  # conservative (v7x per-TC)
    vmem_limit = min((cap * 3) // 4, 96 << 20)          # v7x ~48 MiB, v5e/v6e 96 MiB
    budget = min(vmem_limit - (8 << 20), 48 << 20)      # leave compiler headroom
    return vmem_limit, max(budget, 4 << 20)


def _requant_factors(scale_xs, scale_o):
    """Precompute f32 requant factors on the host (shared with the reference)."""
    sx = np.asarray(scale_xs, dtype=np.float32)
    rq = (np.float32(scale_o) / sx).astype(np.float32)
    inv_o = np.float32(1.0) / np.float32(scale_o)
    return sx, rq, inv_o


# ------------------------------------------------------------------------- #
# Tile sizing (padded-width VMEM accounting + minimum grid length)
# ------------------------------------------------------------------------- #
def _choose_tiles_3d(outer, inner, c_pad_sum, itemsize, budget, min_steps=4):
    def footprint(tr, ti):                      # double-buffered, lane-padded
        return 2 * tr * c_pad_sum * _round_up(ti, 128) * itemsize

    def steps(tr, ti):
        return _cdiv(outer, tr) * _cdiv(inner, ti)

    tile_rows, tile_inner = outer, inner
    # (a) fit the double-buffered tiles under the VMEM budget
    #     (shrink rows first -> keep the 128-lane inner axis wide).
    while footprint(tile_rows, tile_inner) > budget and tile_rows > 1:
        tile_rows = max(1, tile_rows // 2)
    while footprint(tile_rows, tile_inner) > budget and tile_inner > 128:
        tile_inner = max(128, _round_up(_cdiv(tile_inner, 2), 128))
    # (b) guarantee a minimum grid length so the auto-pipeline overlaps DMA with
    #     compute and v7x's two TensorCores both get work.
    while steps(tile_rows, tile_inner) < min_steps and tile_rows > 1:
        tile_rows = max(1, tile_rows // 2)
    while steps(tile_rows, tile_inner) < min_steps and tile_inner > 128:
        tile_inner = max(128, _round_up(_cdiv(tile_inner, 2), 128))
    return tile_rows, tile_inner


def _choose_tiles_2d(outer, pad_cols_sum, itemsize, budget, min_steps=4):
    if outer <= 8:
        return outer                            # single (full) row tile
    def footprint(tr):
        return 2 * _round_up(tr, 8) * pad_cols_sum * itemsize

    tile_rows = outer
    while footprint(tile_rows) > budget and tile_rows > 8:
        tile_rows = max(8, _round_up(tile_rows // 2, 8))
    while _cdiv(outer, tile_rows) < min_steps and tile_rows > 8:
        tile_rows = max(8, _round_up(_cdiv(tile_rows, 2), 8))
    return tile_rows


# ------------------------------------------------------------------------- #
# Kernels
# ------------------------------------------------------------------------- #
def _make_iqcat_kernel_3d(channel_offsets):
    """Concat offsets live on the sublane/channel axis; lane axis stays dense."""
    offs = [int(o) for o in channel_offsets]

    def kernel(scale_x_ref, requant_ref, inv_o_ref, *refs):
        out_ref = refs[-1]
        in_refs = refs[:-1]
        inv_o = inv_o_ref[0]                    # 1 / scale_o (precomputed, SMEM)
        for i, x_ref in enumerate(in_refs):
            sx = scale_x_ref[i]                 # input's own scale
            rm = requant_ref[i]                 # scale_o / scale_x_i (precomputed)
            x = x_ref[...]
            q_x = jnp.clip(jnp.round(x * sx), -128.0, 127.0)     # int8 fake-quant
            q_o = jnp.clip(jnp.round(q_x * rm), -128.0, 127.0)   # requant to scale_o
            out_ref[:, offs[i]:offs[i + 1], :] = (q_o * inv_o).astype(out_ref.dtype)

    return kernel


def _make_iqcat_kernel_2d(col_offsets):
    """Fallback: concat offsets on the lane axis (small `inner`)."""
    offs = [int(o) for o in col_offsets]

    def kernel(scale_x_ref, requant_ref, inv_o_ref, *refs):
        out_ref = refs[-1]
        in_refs = refs[:-1]
        inv_o = inv_o_ref[0]
        for i, x_ref in enumerate(in_refs):
            sx = scale_x_ref[i]
            rm = requant_ref[i]
            x = x_ref[...]
            q_x = jnp.clip(jnp.round(x * sx), -128.0, 127.0)
            q_o = jnp.clip(jnp.round(q_x * rm), -128.0, 127.0)
            out_ref[:, offs[i]:offs[i + 1]] = (q_o * inv_o).astype(out_ref.dtype)

    return kernel


# ------------------------------------------------------------------------- #
# Wrapper
# ------------------------------------------------------------------------- #
def iq_cat_pallas(tensors, scale_xs, scale_o, dim):
    """Quantized concat: each input requantized to scale_o, concatenated on `dim`."""
    ndim = tensors[0].ndim
    dim = dim % ndim
    shape0 = tensors[0].shape

    outer = int(np.prod(shape0[:dim])) if dim > 0 else 1
    inner = int(np.prod(shape0[dim + 1:])) if dim + 1 < ndim else 1
    c_sizes = [int(t.shape[dim]) for t in tensors]
    c_total = int(sum(c_sizes))

    dtype = tensors[0].dtype
    itemsize = jnp.dtype(dtype).itemsize
    total_elems = outer * c_total * inner

    sx_arr, rq_arr, inv_o = _requant_factors(scale_xs, scale_o)
    sx_arr = jnp.asarray(sx_arr)
    rq_arr = jnp.asarray(rq_arr)
    inv_o_arr = jnp.asarray(np.asarray([inv_o], dtype=np.float32))

    vmem_limit, budget = _vmem_budget_bytes()
    cost = pl.CostEstimate(flops=10 * total_elems, transcendentals=0,
                           bytes_accessed=2 * total_elems * itemsize)

    if inner >= 128:
        # ---- 3-D lane-dense path: (outer, C_i, inner) --------------------- #
        flat = [t.reshape(outer, c, inner) for t, c in zip(tensors, c_sizes)]
        c_pad_sum = sum(_round_up(c, 8) for c in c_sizes) + _round_up(c_total, 8)
        tile_rows, tile_inner = _choose_tiles_3d(outer, inner, c_pad_sum,
                                                 itemsize, budget)
        grid = (_cdiv(outer, tile_rows), _cdiv(inner, tile_inner))
        # index_maps receive the scalar-prefetch refs as trailing args -> absorb.
        idx = lambda r, c, *_: (r, 0, c)
        in_specs = [pl.BlockSpec((tile_rows, c, tile_inner), idx) for c in c_sizes]
        out_specs = pl.BlockSpec((tile_rows, c_total, tile_inner), idx)
        kernel = _make_iqcat_kernel_3d(np.concatenate([[0], np.cumsum(c_sizes)]))
        dims_sem = ("parallel", "parallel")
        flat_out_shape = (outer, c_total, inner)
    else:
        # ---- 2-D fallback: (outer, C_i * inner) --------------------------- #
        widths = [c * inner for c in c_sizes]
        out_cols = int(sum(widths))
        flat = [t.reshape(outer, w) for t, w in zip(tensors, widths)]
        pad_cols = sum(_round_up(w, 128) for w in widths) + _round_up(out_cols, 128)
        tile_rows = _choose_tiles_2d(outer, pad_cols, itemsize, budget)
        grid = (_cdiv(outer, tile_rows),)
        idx = lambda r, *_: (r, 0)
        in_specs = [pl.BlockSpec((tile_rows, w), idx) for w in widths]
        out_specs = pl.BlockSpec((tile_rows, out_cols), idx)
        kernel = _make_iqcat_kernel_2d(np.concatenate([[0], np.cumsum(widths)]))
        dims_sem = ("parallel",)
        flat_out_shape = (outer, out_cols)

    grid_spec = pltpu.PrefetchScalarGridSpec(
        num_scalar_prefetch=3,                  # scale_x, requant_mul, inv_scale_o
        grid=grid,
        in_specs=in_specs,
        out_specs=out_specs,
    )

    out_flat = pl.pallas_call(
        kernel,
        out_shape=jax.ShapeDtypeStruct(flat_out_shape, dtype),
        grid_spec=grid_spec,
        compiler_params=pltpu.CompilerParams(
            dimension_semantics=dims_sem,       # shard across TCs on v7x
            vmem_limit_bytes=int(vmem_limit),
        ),
        cost_estimate=cost,
    )(sx_arr, rq_arr, inv_o_arr, *flat)

    out_shape = list(shape0)
    out_shape[dim] = c_total
    return out_flat.reshape(tuple(out_shape))


# ------------------------------------------------------------------------- #
# Layer wrapper (scale bookkeeping, mirrors linger's iqCatLayer)
# ------------------------------------------------------------------------- #
class IQCatLayer:
    """JAX mirror of linger's iqCatLayer (luna_quant platform, int8)."""

    def __init__(self):
        self.scale_o = 0.0     # buffer: zeros(1)
        self.running_o = 0.0   # buffer: zeros(1)
        self.training = True

    def __call__(self, tensors, scale_datas, local_scale_o, dim, quant_mode="qvalue"):
        momentum = 0.1
        if self.training:
            self.running_o = self.running_o * (1.0 - momentum) + momentum * (127.0 / local_scale_o)
            if quant_mode == "qvalue":
                # TODO(synk): Python round() is banker's rounding; verify tie
                # behaviour vs. linger's QValue snap at exact half-integer log2.
                scale_z = math.pow(2.0, round(math.log(local_scale_o, 2)))
            else:
                scale_z = float(local_scale_o)
            # NOTE: in training, the persistent scale_o buffer is NOT updated
            # (matches the PyTorch code).
        else:
            assert self.running_o > 0, "Must at least training one batch"
            if quant_mode == "qvalue":
                scale_z = math.pow(2.0, round(math.log(127.0 / self.running_o, 2)))
            else:
                scale_z = float(np.float32((math.pow(2, 8 - 1) - 1) / self.running_o))
            self.scale_o = scale_z

        y = iq_cat_pallas(tensors, scale_datas, scale_z, dim)
        # result is an int8 fake-quant float tensor at scale `scale_z`
        return y, scale_z


# ------------------------------------------------------------------------- #
# Pure-JAX reference (same f32 factor precomputation as the kernel)
# ------------------------------------------------------------------------- #
def _reference(tensors, scale_xs, scale_o, dim):
    sx_arr, rq_arr, inv_o = _requant_factors(scale_xs, scale_o)
    outs = []
    for x, sx, rq in zip(tensors, sx_arr, rq_arr):
        q_x = jnp.clip(jnp.round(x * jnp.float32(sx)), -128.0, 127.0)
        q_o = jnp.clip(jnp.round(q_x * jnp.float32(rq)), -128.0, 127.0)
        outs.append(q_o * jnp.float32(inv_o))
    return jnp.concatenate(outs, axis=dim)


if __name__ == "__main__":
    key = jax.random.PRNGKey(0)
    k0, k1, k2, k3, k4 = jax.random.split(key, 5)

    # ---------------- Test 1: NCHW channel concat (3-D lane-dense path) ---- #
    x0 = jax.random.uniform(k0, (2, 4, 16, 16), jnp.float32, minval=-3.0, maxval=3.0)
    x1 = jax.random.uniform(k1, (2, 4, 16, 16), jnp.float32, minval=-1.5, maxval=1.5)
    x2 = jax.random.uniform(k2, (2, 6, 16, 16), jnp.float32, minval=-2.0, maxval=2.0)

    scale_x0 = 127.0 / 3.0
    scale_x1 = 127.0 / 1.5
    scale_x2 = 127.0 / 2.0
    local_scale_o = 127.0 / 3.0

    layer = IQCatLayer()
    layer.training = True
    y, scale_o = layer([x0, x1, x2], [scale_x0, scale_x1, scale_x2], local_scale_o,
                       dim=1, quant_mode="qvalue")
    y = jax.block_until_ready(y)
    assert y.shape == (2, 14, 16, 16), y.shape

    y_ref = _reference([x0, x1, x2], [scale_x0, scale_x1, scale_x2], scale_o, dim=1)
    assert jnp.allclose(y, y_ref, atol=1e-6), float(jnp.max(jnp.abs(y - y_ref)))

    # Eval path (uses running_o accumulated above).
    layer.training = False
    y_eval, scale_o_eval = layer([x0, x1, x2], [scale_x0, scale_x1, scale_x2],
                                 local_scale_o, dim=1, quant_mode="qvalue")
    y_eval = jax.block_until_ready(y_eval)
    y_eval_ref = _reference([x0, x1, x2], [scale_x0, scale_x1, scale_x2],
                            scale_o_eval, dim=1)
    assert jnp.allclose(y_eval, y_eval_ref, atol=1e-6)

    # ---------------- Test 2: last-axis concat (2-D fallback path) --------- #
    x3 = jax.random.uniform(k3, (2, 8, 16), jnp.float32, minval=-2.0, maxval=2.0)
    x4 = jax.random.uniform(k4, (2, 8, 24), jnp.float32, minval=-1.0, maxval=1.0)
    scale_x3 = 127.0 / 2.0
    scale_x4 = 127.0 / 1.0
    scale_o2 = 64.0
    y2 = jax.block_until_ready(
        iq_cat_pallas([x3, x4], [scale_x3, scale_x4], scale_o2, dim=2))
    assert y2.shape == (2, 8, 40), y2.shape
    y2_ref = _reference([x3, x4], [scale_x3, scale_x4], scale_o2, dim=2)
    assert jnp.allclose(y2, y2_ref, atol=1e-6), float(jnp.max(jnp.abs(y2 - y2_ref)))

    print("KERNEL_OK")
</pallas_src>

<mosaic_0001>
module attributes {stable_mosaic.version = 11 : i64} {
  func.func @kernel(%arg0: i32, %arg1: i32, %arg2: memref<3xf32, #tpu.memory_space<smem>>, %arg3: memref<3xf32, #tpu.memory_space<smem>>, %arg4: memref<1xf32, #tpu.memory_space<smem>>, %arg5: memref<1x4x128xf32, #tpu.memory_space<vmem>>, %arg6: memref<1x4x128xf32, #tpu.memory_space<vmem>>, %arg7: memref<1x6x128xf32, #tpu.memory_space<vmem>>, %arg8: memref<1x14x128xf32, #tpu.memory_space<vmem>>) attributes {dimension_semantics = [#tpu.dimension_semantics<parallel>, #tpu.dimension_semantics<parallel>], iteration_bounds = array<i64: 2, 2>, scalar_prefetch = 3 : i64, scratch_operands = 0 : i64, tpu.core_type = #tpu.core_type<tc>, window_params = [{transform_indices = @transform_0, window_bounds = array<i64: 1, 4, 128>}, {transform_indices = @transform_1, window_bounds = array<i64: 1, 4, 128>}, {transform_indices = @transform_2, window_bounds = array<i64: 1, 6, 128>}, {transform_indices = @transform_3, window_bounds = array<i64: 1, 14, 128>}]} {
    %c0 = arith.constant 0 : index
    %0 = memref.load %arg4[%c0] : memref<1xf32, #tpu.memory_space<smem>>
    %c0_0 = arith.constant 0 : index
    %1 = memref.load %arg2[%c0_0] : memref<3xf32, #tpu.memory_space<smem>>
    %c0_1 = arith.constant 0 : index
    %2 = memref.load %arg3[%c0_1] : memref<3xf32, #tpu.memory_space<smem>>
    %c0_2 = arith.constant 0 : index
    %c0_3 = arith.constant 0 : index
    %c0_4 = arith.constant 0 : index
    %3 = vector.load %arg5[%c0_2, %c0_3, %c0_4] : memref<1x4x128xf32, #tpu.memory_space<vmem>>, vector<1x4x128xf32>
    %4 = vector.broadcast %1 : f32 to vector<1x4x128xf32>
    %5 = arith.mulf %3, %4 : vector<1x4x128xf32>
    %6 = math.roundeven %5 : vector<1x4x128xf32>
    %cst = arith.constant -1.280000e+02 : f32
    %cst_5 = arith.constant 1.270000e+02 : f32
    %7 = vector.broadcast %cst : f32 to vector<1x4x128xf32>
    %8 = arith.maximumf %7, %6 : vector<1x4x128xf32>
    %9 = vector.broadcast %cst_5 : f32 to vector<1x4x128xf32>
    %10 = arith.minimumf %9, %8 : vector<1x4x128xf32>
    %11 = vector.broadcast %2 : f32 to vector<1x4x128xf32>
    %12 = arith.mulf %10, %11 : vector<1x4x128xf32>
    %13 = math.roundeven %12 : vector<1x4x128xf32>
    %cst_6 = arith.constant -1.280000e+02 : f32
    %cst_7 = arith.constant 1.270000e+02 : f32
    %14 = vector.broadcast %cst_6 : f32 to vector<1x4x128xf32>
    %15 = arith.maximumf %14, %13 : vector<1x4x128xf32>
    %16 = vector.broadcast %cst_7 : f32 to vector<1x4x128xf32>
    %17 = arith.minimumf %16, %15 : vector<1x4x128xf32>
    %18 = vector.broadcast %0 : f32 to vector<1x4x128xf32>
    %19 = arith.mulf %17, %18 : vector<1x4x128xf32>
    %c0_8 = arith.constant 0 : index
    %c0_9 = arith.constant 0 : index
    %c0_10 = arith.constant 0 : index
    %20 = vector.load %arg8[%c0_8, %c0_9, %c0_10] : memref<1x14x128xf32, #tpu.memory_space<vmem>>, vector<1x4x128xf32>
    tpu.vector_store %arg8[%c0_8, %c0_9, %c0_10], %19 {strides = array<i32>} : memref<1x14x128xf32, #tpu.memory_space<vmem>>, vector<1x4x128xf32>,
    %c1 = arith.constant 1 : index
    %21 = memref.load %arg2[%c1] : memref<3xf32, #tpu.memory_space<smem>>
    %c1_11 = arith.constant 1 : index
    %22 = memref.load %arg3[%c1_11] : memref<3xf32, #tpu.memory_space<smem>>
    %c0_12 = arith.constant 0 : index
    %c0_13 = arith.constant 0 : index
    %c0_14 = arith.constant 0 : index
    %23 = vector.load %arg6[%c0_12, %c0_13, %c0_14] : memref<1x4x128xf32, #tpu.memory_space<vmem>>, vector<1x4x128xf32>
    %24 = vector.broadcast %21 : f32 to vector<1x4x128xf32>
    %25 = arith.mulf %23, %24 : vector<1x4x128xf32>
    %26 = math.roundeven %25 : vector<1x4x128xf32>
    %cst_15 = arith.constant -1.280000e+02 : f32
    %cst_16 = arith.constant 1.270000e+02 : f32
    %27 = vector.broadcast %cst_15 : f32 to vector<1x4x128xf32>
    %28 = arith.maximumf %27, %26 : vector<1x4x128xf32>
    %29 = vector.broadcast %cst_16 : f32 to vector<1x4x128xf32>
    %30 = arith.minimumf %29, %28 : vector<1x4x128xf32>
    %31 = vector.broadcast %22 : f32 to vector<1x4x128xf32>
    %32 = arith.mulf %30, %31 : vector<1x4x128xf32>
    %33 = math.roundeven %32 : vector<1x4x128xf32>
    %cst_17 = arith.constant -1.280000e+02 : f32
    %cst_18 = arith.constant 1.270000e+02 : f32
    %34 = vector.broadcast %cst_17 : f32 to vector<1x4x128xf32>
    %35 = arith.maximumf %34, %33 : vector<1x4x128xf32>
    %36 = vector.broadcast %cst_18 : f32 to vector<1x4x128xf32>
    %37 = arith.minimumf %36, %35 : vector<1x4x128xf32>
    %38 = vector.broadcast %0 : f32 to vector<1x4x128xf32>
    %39 = arith.mulf %37, %38 : vector<1x4x128xf32>
    %c0_19 = arith.constant 0 : index
    %c4 = arith.constant 4 : index
    %c0_20 = arith.constant 0 : index
    %40 = vector.load %arg8[%c0_19, %c4, %c0_20] : memref<1x14x128xf32, #tpu.memory_space<vmem>>, vector<1x4x128xf32>
    tpu.vector_store %arg8[%c0_19, %c4, %c0_20], %39 {strides = array<i32>} : memref<1x14x128xf32, #tpu.memory_space<vmem>>, vector<1x4x128xf32>,
    %c2 = arith.constant 2 : index
    %41 = memref.load %arg2[%c2] : memref<3xf32, #tpu.memory_space<smem>>
    %c2_21 = arith.constant 2 : index
    %42 = memref.load %arg3[%c2_21] : memref<3xf32, #tpu.memory_space<smem>>
    %c0_22 = arith.constant 0 : index
    %c0_23 = arith.constant 0 : index
    %c0_24 = arith.constant 0 : index
    %43 = vector.load %arg7[%c0_22, %c0_23, %c0_24] : memref<1x6x128xf32, #tpu.memory_space<vmem>>, vector<1x6x128xf32>
    %44 = vector.broadcast %41 : f32 to vector<1x6x128xf32>
    %45 = arith.mulf %43, %44 : vector<1x6x128xf32>
    %46 = math.roundeven %45 : vector<1x6x128xf32>
    %cst_25 = arith.constant -1.280000e+02 : f32
    %cst_26 = arith.constant 1.270000e+02 : f32
    %47 = vector.broadcast %cst_25 : f32 to vector<1x6x128xf32>
    %48 = arith.maximumf %47, %46 : vector<1x6x128xf32>
    %49 = vector.broadcast %cst_26 : f32 to vector<1x6x128xf32>
    %50 = arith.minimumf %49, %48 : vector<1x6x128xf32>
    %51 = vector.broadcast %42 : f32 to vector<1x6x128xf32>
    %52 = arith.mulf %50, %51 : vector<1x6x128xf32>
    %53 = math.roundeven %52 : vector<1x6x128xf32>
    %cst_27 = arith.constant -1.280000e+02 : f32
    %cst_28 = arith.constant 1.270000e+02 : f32
    %54 = vector.broadcast %cst_27 : f32 to vector<1x6x128xf32>
    %55 = arith.maximumf %54, %53 : vector<1x6x128xf32>
    %56 = vector.broadcast %cst_28 : f32 to vector<1x6x128xf32>
    %57 = arith.minimumf %56, %55 : vector<1x6x128xf32>
    %58 = vector.broadcast %0 : f32 to vector<1x6x128xf32>
    %59 = arith.mulf %57, %58 : vector<1x6x128xf32>
    %c0_29 = arith.constant 0 : index
    %c8 = arith.constant 8 : index
    %c0_30 = arith.constant 0 : index
    %60 = vector.load %arg8[%c0_29, %c8, %c0_30] : memref<1x14x128xf32, #tpu.memory_space<vmem>>, vector<1x6x128xf32>
    tpu.vector_store %arg8[%c0_29, %c8, %c0_30], %59 {strides = array<i32>} : memref<1x14x128xf32, #tpu.memory_space<vmem>>, vector<1x6x128xf32>,
    return
  }
  func.func @transform_0(%arg0: i32, %arg1: i32, %arg2: memref<3xf32, #tpu.memory_space<smem>>, %arg3: memref<3xf32, #tpu.memory_space<smem>>, %arg4: memref<1xf32, #tpu.memory_space<smem>>) -> (i32, i32, i32) {
    %c0_i32 = arith.constant 0 : i32
    %c0_i32_0 = arith.constant 0 : i32
    return %arg0, %c0_i32, %arg1 : i32, i32, i32
  }
  func.func @transform_1(%arg0: i32, %arg1: i32, %arg2: memref<3xf32, #tpu.memory_space<smem>>, %arg3: memref<3xf32, #tpu.memory_space<smem>>, %arg4: memref<1xf32, #tpu.memory_space<smem>>) -> (i32, i32, i32) {
    %c0_i32 = arith.constant 0 : i32
    %c0_i32_0 = arith.constant 0 : i32
    return %arg0, %c0_i32, %arg1 : i32, i32, i32
  }
  func.func @transform_2(%arg0: i32, %arg1: i32, %arg2: memref<3xf32, #tpu.memory_space<smem>>, %arg3: memref<3xf32, #tpu.memory_space<smem>>, %arg4: memref<1xf32, #tpu.memory_space<smem>>) -> (i32, i32, i32) {
    %c0_i32 = arith.constant 0 : i32
    %c0_i32_0 = arith.constant 0 : i32
    return %arg0, %c0_i32, %arg1 : i32, i32, i32
  }
  func.func @transform_3(%arg0: i32, %arg1: i32, %arg2: memref<3xf32, #tpu.memory_space<smem>>, %arg3: memref<3xf32, #tpu.memory_space<smem>>, %arg4: memref<1xf32, #tpu.memory_space<smem>>) -> (i32, i32, i32) {
    %c0_i32 = arith.constant 0 : i32
    %c0_i32_0 = arith.constant 0 : i32
    return %arg0, %c0_i32, %arg1 : i32, i32, i32
  }
}

</mosaic_0001>

<llo_original>
// kernel: tpu_custom_call.1
$region0: #{tpu_custom_call.1}
  #allocation0 [shape = 'u32[]', space=smem, size = 0x4, offset = 0x4, fixed_abs, tag = 'smem constant byte address 0x4 - core index']
  #allocation1 [shape = 'u32[72,128]{1,0:T(1,128)}', space=vmem, size = 0x9000, scoped, tag = 'internal scratch']
  #allocation2 [shape = 's32[1]{0}', space=sflag, size = 0x4, scoped, tag = 'scoped memory for tpu_custom_call.1']
  #allocation3 [shape = 'u8[512]{0}', space=smem, size = 0x200, scoped, tag = 'prefetched SMEM operand 0']
  #allocation4 [shape = 'u8[512]{0}', space=smem, size = 0x200, scoped, tag = 'prefetched SMEM operand 1']
  #allocation5 [shape = 'f32[1]{0:T(128)S(6)}', space=smem, size = 0x200, scoped, tag = 'prefetched SMEM operand 2']
  %s0 = inlined_call_operand.vmem [shape: f32[3], index: 0, kind: input, shape index: {}]
  %s1 = inlined_call_operand.vmem [shape: f32[3], index: 1, kind: input, shape index: {}]
  %s2 = inlined_call_operand.<no memory space> [shape: f32[1], index: 2, kind: input, shape index: {}]
  %s3 = inlined_call_operand.vmem [shape: f32[2,4,256], index: 3, kind: input, shape index: {}]
  %s4 = inlined_call_operand.vmem [shape: f32[2,4,256], index: 4, kind: input, shape index: {}]
  %s5 = inlined_call_operand.vmem [shape: f32[2,6,256], index: 5, kind: input, shape index: {}]
  %s6 = inlined_call_operand.vmem [shape: f32[2,14,256], index: 6, kind: output, shape index: {}]
  %s7 = sld [smem:[#allocation0]]
  $region79: #{tpu_custom_call.1} parent=0
    _
  %s9 = ssub.s32 1, %s7
  %s10 = scalar_select 0, %s9, %s7
  %s12 = sshll.u32 %s0, 4
  %s13 = int_to_ptr.vmem [resolvable:$true] %s12
  %15 = dma.vmem_to_smem %s13, 16, [#allocation3], [#allocation2]
  %s17 = sshll.u32 %s1, 4
  %s18 = int_to_ptr.vmem [resolvable:$true] %s17
  %20 = dma.vmem_to_smem %s18, 16, [#allocation4], [#allocation2]
  %21 = sst [smem:[#allocation5]] %s2
  %23 = dma.done [#allocation2], 32
  %24 = sfence
  $region1: #{tpu_custom_call.1} parent=0
    #allocation6 [shape = 'u8[16384]{0}', space=vmem, size = 0x4000, scoped, tag = 'output window, operand 0']
    loop: start=0, step=1, limit=6
    $region2: #{tpu_custom_call.1} parent=1 // loop_pre_header
      _
    $region3: #{tpu_custom_call.1} parent=1 // loop_header
      %s26 = sphi 0, %s30
      %p27 = scmp.ge.s32.totalorder %s26, 6
      %s33 = sphi 0, %s45
      %s34 = sphi 0, %s41
      %s35 = sphi 0, %s33
      %s36 = sphi 0, %s34
      %s37 = sphi 0, %s35
      %s38 = sphi 0, %s36
      %s50 = sphi 0, %s52
      %s53 = sphi 0, %s50
      %s54 = sphi 0, %s53
      %s70 = sphi 0, %s54
      %s78 = sphi 0, %s80
      %s81 = sphi 0, %s78
      %s82 = sphi 0, %s81
      %s98 = sphi 0, %s82
      %s106 = sphi 0, %s108
      %s109 = sphi 0, %s106
      %s110 = sphi 0, %s109
      %s126 = sphi 0, %s110
      %s134 = sphi 0, %s136
      %s137 = sphi 0, %s134
      %s138 = sphi 0, %s137
      %s154 = sphi 0, %s138
    $region4: #{tpu_custom_call.1} parent=1 // loop_header_branch
      %29 = sbr.rel (%p27) target = $region8
    $region5: #{tpu_custom_call.1} parent=1 // loop_body
      %s31 = ssub.s32 %s26, 1
      %s32 = ssub.s32 %s26, 2
      %s39 = sadd.s32 1, %s34
      %p40 = scmp.ge.s32.totalorder %s39, 2
      %s41 = scalar_select %p40, 0, %s39
      %s42 = sadd.s32 1, %s33
      %s43 = scalar_select %p40, %s42, %s33
      %p44 = scmp.ge.s32.totalorder %s43, 2
      %s45 = scalar_select %p44, 0, %s43
      %s46 = ssub.s32 %s33, %s45
      %s47 = ssub.s32 %s34, %s41
      %s48 = sor.u32 %s46, %s47
      %p49 = scmp.eq.s32.totalorder %s48, 0
      %s51 = sadd.s32 %s50, 1
      %s52 = scalar_select %p49, %s50, %s51
      %p55 = pneg %p49
      %p56 = scmp.eq.s32.totalorder %s26, 3
      %p57 = por %p55, %p56
      %p58 = scmp.ne.s32.totalorder %s50, %s53
      %p59 = scmp.eq.s32.totalorder %s26, 0
      %p60 = por %p58, %p59
      %p61 = scmp.ne.s32.totalorder %s50, %s53
      %p62 = scmp.eq.s32.totalorder %s31, 3
      %p63 = por %p61, %p62
      %p64 = scmp.ne.s32.totalorder %s53, %s54
      %p65 = scmp.eq.s32.totalorder %s31, 0
      %p66 = por %p64, %p65
      %p67 = scmp.ne.s32.totalorder %s53, %s54
      %p68 = scmp.eq.s32.totalorder %s32, 3
      %p69 = por %p67, %p68
      %p71 = scmp.ne.s32.totalorder %s54, %s70
      %p72 = scmp.eq.s32.totalorder %s32, 0
      %p73 = por %p71, %p72
      %s74 = ssub.s32 %s33, %s45
      %s75 = ssub.s32 %s34, %s41
      %s76 = sor.u32 %s74, %s75
      %p77 = scmp.eq.s32.totalorder %s76, 0
      %s79 = sadd.s32 %s78, 1
      %s80 = scalar_select %p77, %s78, %s79
      %p83 = pneg %p77
      %p84 = scmp.eq.s32.totalorder %s26, 3
      %p85 = por %p83, %p84
      %p86 = scmp.ne.s32.totalorder %s78, %s81
      %p87 = scmp.eq.s32.totalorder %s26, 0
      %p88 = por %p86, %p87
      %p89 = scmp.ne.s32.totalorder %s78, %s81
      %p90 = scmp.eq.s32.totalorder %s31, 3
      %p91 = por %p89, %p90
      %p92 = scmp.ne.s32.totalorder %s81, %s82
      %p93 = scmp.eq.s32.totalorder %s31, 0
      %p94 = por %p92, %p93
      %p95 = scmp.ne.s32.totalorder %s81, %s82
      %p96 = scmp.eq.s32.totalorder %s32, 3
      %p97 = por %p95, %p96
      %p99 = scmp.ne.s32.totalorder %s82, %s98
      %p100 = scmp.eq.s32.totalorder %s32, 0
      %p101 = por %p99, %p100
      %s102 = ssub.s32 %s33, %s45
      %s103 = ssub.s32 %s34, %s41
      %s104 = sor.u32 %s102, %s103
      %p105 = scmp.eq.s32.totalorder %s104, 0
      %s107 = sadd.s32 %s106, 1
      %s108 = scalar_select %p105, %s106, %s107
      %p111 = pneg %p105
      %p112 = scmp.eq.s32.totalorder %s26, 3
      %p113 = por %p111, %p112
      %p114 = scmp.ne.s32.totalorder %s106, %s109
      %p115 = scmp.eq.s32.totalorder %s26, 0
      %p116 = por %p114, %p115
      %p117 = scmp.ne.s32.totalorder %s106, %s109
      %p118 = scmp.eq.s32.totalorder %s31, 3
      %p119 = por %p117, %p118
      %p120 = scmp.ne.s32.totalorder %s109, %s110
      %p121 = scmp.eq.s32.totalorder %s31, 0
      %p122 = por %p120, %p121
      %p123 = scmp.ne.s32.totalorder %s109, %s110
      %p124 = scmp.eq.s32.totalorder %s32, 3
      %p125 = por %p123, %p124
      %p127 = scmp.ne.s32.totalorder %s110, %s126
      %p128 = scmp.eq.s32.totalorder %s32, 0
      %p129 = por %p127, %p128
      %s130 = ssub.s32 %s33, %s45
      %s131 = ssub.s32 %s34, %s41
      %s132 = sor.u32 %s130, %s131
      %p133 = scmp.eq.s32.totalorder %s132, 0
      %s135 = sadd.s32 %s134, 1
      %s136 = scalar_select %p133, %s134, %s135
      %p139 = pneg %p133
      %p140 = scmp.eq.s32.totalorder %s26, 3
      %p141 = por %p139, %p140
      %p142 = scmp.ne.s32.totalorder %s134, %s137
      %p143 = scmp.eq.s32.totalorder %s26, 0
      %p144 = por %p142, %p143
      %p145 = scmp.ne.s32.totalorder %s134, %s137
      %p146 = scmp.eq.s32.totalorder %s31, 3
      %p147 = por %p145, %p146
      %p148 = scmp.ne.s32.totalorder %s137, %s138
      %p149 = scmp.eq.s32.totalorder %s31, 0
      %p150 = por %p148, %p149
      %p151 = scmp.ne.s32.totalorder %s137, %s138
      %p152 = scmp.eq.s32.totalorder %s32, 3
      %p153 = por %p151, %p152
      %p155 = scmp.ne.s32.totalorder %s138, %s154
      %p156 = scmp.eq.s32.totalorder %s32, 0
      %p157 = por %p155, %p156
      %p158 = scmp.le.s32.totalorder 1, %s26
      %p159 = scmp.lt.s32.totalorder %s26, 5
      %p160 = pnand %p158, %p159
      %p161 = pneg %p160
      // Predicated region
      $region9: #{tpu_custom_call.1} parent=5 // pred_check
        _
      $region10: #{tpu_custom_call.1} parent=5 // pred_check_branch
        %163 = sbr.rel (%p160) target = $region12
      $region11: #{tpu_custom_call.1} parent=5 // pred_region
        %s164 = ssub.s32 %s26, 1
      $region12: #{tpu_custom_call.1} parent=5 // pred_fallthru
        _
      %p165 = scmp.lt.s32.totalorder %s26, 4
      // Predicated region
      $region13: #{tpu_custom_call.1} parent=5 // pred_check
        %p166 = pneg %p165
      $region14: #{tpu_custom_call.1} parent=5 // pred_check_branch
        %168 = sbr.rel (%p166) target = $region16
      $region15: #{tpu_custom_call.1} parent=5 // pred_region
        // Predicated region
        $region17: #{tpu_custom_call.1} parent=15 // pred_check
          %p169 = pneg %p60
        $region18: #{tpu_custom_call.1} parent=15 // pred_check_branch
          %171 = sbr.rel (%p169) target = $region20
        $region19: #{tpu_custom_call.1} parent=15 // pred_region
          %p172 = scmp.lt.s32.totalorder %s33, 1
          %s173 = scalar_select %p172, %s33, 1
          %p174 = scmp.lt.s32.totalorder %s34, 1
          %s175 = scalar_select %p174, %s34, 1
          %s176 = smul.addr %s173, 2
          %s177 = sadd.s32 %s175, %s176
          %s178 = smul.addr %s177, 4
          %s179 = scalar_lea.vmem %s3, %s178
        $region20: #{tpu_custom_call.1} parent=15 // pred_fallthru
          _
        // Predicated region
        $region21: #{tpu_custom_call.1} parent=15 // pred_check
          %p180 = pneg %p88
        $region22: #{tpu_custom_call.1} parent=15 // pred_check_branch
          %182 = sbr.rel (%p180) target = $region24
        $region23: #{tpu_custom_call.1} parent=15 // pred_region
          %p183 = scmp.lt.s32.totalorder %s33, 1
          %s184 = scalar_select %p183, %s33, 1
          %p185 = scmp.lt.s32.totalorder %s34, 1
          %s186 = scalar_select %p185, %s34, 1
          %s187 = smul.addr %s184, 2
          %s188 = sadd.s32 %s186, %s187
          %s189 = smul.addr %s188, 4
          %s190 = scalar_lea.vmem %s4, %s189
        $region24: #{tpu_custom_call.1} parent=15 // pred_fallthru
          _
        // Predicated region
        $region25: #{tpu_custom_call.1} parent=15 // pred_check
          %p191 = pneg %p116
        $region26: #{tpu_custom_call.1} parent=15 // pred_check_branch
          %193 = sbr.rel (%p191) target = $region28
        $region27: #{tpu_custom_call.1} parent=15 // pred_region
          %p194 = scmp.lt.s32.totalorder %s33, 1
          %s195 = scalar_select %p194, %s33, 1
          %p196 = scmp.lt.s32.totalorder %s34, 1
          %s197 = scalar_select %p196, %s34, 1
          %s198 = smul.addr %s195, 2
          %s199 = sadd.s32 %s197, %s198
          %s200 = smul.addr %s199, 8
          %s201 = scalar_lea.vmem %s5, %s200
        $region28: #{tpu_custom_call.1} parent=15 // pred_fallthru
          _
      $region16: #{tpu_custom_call.1} parent=5 // pred_fallthru
        _
      %p202 = scmp.le.s32.totalorder 1, %s26
      %p203 = scmp.lt.s32.totalorder %s26, 5
      %p204 = pnand %p202, %p203
      %p205 = pneg %p204
      // Predicated region
      $region29: #{tpu_custom_call.1} parent=5 // pred_check
        _
      $region30: #{tpu_custom_call.1} parent=5 // pred_check_branch
        %207 = sbr.rel (%p204) target = $region32
      $region31: #{tpu_custom_call.1} parent=5 // pred_region
        %s208 = ssub.s32 %s26, 1
        %p209 = scmp.lt.s32.totalorder %s35, 1
        %s210 = scalar_select %p209, %s35, 1
        %p211 = scmp.lt.s32.totalorder %s36, 1
        %s212 = scalar_select %p211, %s36, 1
        %s213 = smul.addr %s210, 2
        %s214 = sadd.s32 %s212, %s213
        %s215 = smul.addr %s214, 4
        %s216 = scalar_lea.vmem %s3, %s215
        %p217 = pneg %p66
        %p218 = pneg %p63
        %p219 = scmp.lt.s32.totalorder %s35, 1
        %s220 = scalar_select %p219, %s35, 1
        %p221 = scmp.lt.s32.totalorder %s36, 1
        %s222 = scalar_select %p221, %s36, 1
        %s223 = smul.addr %s220, 2
        %s224 = sadd.s32 %s222, %s223
        %s225 = smul.addr %s224, 4
        %s226 = scalar_lea.vmem %s4, %s225
        %p227 = pneg %p94
        %p228 = pneg %p91
        %p229 = scmp.lt.s32.totalorder %s35, 1
        %s230 = scalar_select %p229, %s35, 1
        %p231 = scmp.lt.s32.totalorder %s36, 1
        %s232 = scalar_select %p231, %s36, 1
        %s233 = smul.addr %s230, 2
        %s234 = sadd.s32 %s232, %s233
        %s235 = smul.addr %s234, 8
        %s236 = scalar_lea.vmem %s5, %s235
        %p237 = pneg %p122
        %p238 = pneg %p119
        %p239 = pneg %p150
        %p240 = pneg %p147
        %s241 = sand.u32 %s137, 1
        %s242 = sand.u32 %s137, 1
        %s243 = smul.addr %s242, 16
        %s244 = scalar_lea.vmem [#allocation6], %s243
        %p245 = scmp.lt.s32.totalorder %s35, 1
        %s246 = scalar_select %p245, %s35, 1
        %p247 = scmp.lt.s32.totalorder %s36, 1
        %s248 = scalar_select %p247, %s36, 1
        %s249 = smul.addr %s246, 2
        %s250 = sadd.s32 %s248, %s249
        %s251 = smul.addr %s250, 4
        %s252 = scalar_lea.vmem %s3, %s251
        %p253 = scmp.lt.s32.totalorder %s35, 1
        %s254 = scalar_select %p253, %s35, 1
        %p255 = scmp.lt.s32.totalorder %s36, 1
        %s256 = scalar_select %p255, %s36, 1
        %s257 = smul.addr %s254, 2
        %s258 = sadd.s32 %s256, %s257
        %s259 = smul.addr %s258, 4
        %s260 = scalar_lea.vmem %s4, %s259
        %p261 = scmp.lt.s32.totalorder %s35, 1
        %s262 = scalar_select %p261, %s35, 1
        %p263 = scmp.lt.s32.totalorder %s36, 1
        %s264 = scalar_select %p263, %s36, 1
        %s265 = smul.addr %s262, 2
        %s266 = sadd.s32 %s264, %s265
        %s267 = smul.addr %s266, 8
        %s268 = scalar_lea.vmem %s5, %s267
        %s269 = sld [smem:[#allocation5]]
        %s270 = sld [smem:[#allocation3]]
        %s271 = sld [smem:[#allocation4]]
        %v272 = vld [vmem:[%s252] sm:$0xf]
        %v273 = vstv %s270
        %v274 = vmul.f32 %v272, %v273
        %v275 = vround.ne.pseudo %v274
        %v276 = vmax.f32 %v275, -128.0
        %v277 = vmin.f32 %v276, 127.0
        %v278 = vstv %s271
        %v279 = vmul.f32 %v277, %v278
        %v280 = vround.ne.pseudo %v279
        %v281 = vmax.f32 %v280, -128.0
        %v282 = vmin.f32 %v281, 127.0
        %v283 = vstv %s269
        %v284 = vmul.f32 %v282, %v283
        %285 = vst [vmem:[%s244] sm:$0xf] %v284
        %s286 = sld [smem:[#allocation3 + $0x1]]
        %s287 = sld [smem:[#allocation4 + $0x1]]
        %v288 = vld [vmem:[%s260] sm:$0xf]
        %v289 = vstv %s286
        %v290 = vmul.f32 %v288, %v289
        %v291 = vround.ne.pseudo %v290
        %v292 = vmax.f32 %v291, -128.0
        %v293 = vmin.f32 %v292, 127.0
        %v294 = vstv %s287
        %v295 = vmul.f32 %v293, %v294
        %v296 = vround.ne.pseudo %v295
        %v297 = vmax.f32 %v296, -128.0
        %v298 = vmin.f32 %v297, 127.0
        %v299 = vmul.f32 %v298, %v283
        %300 = vst [vmem:[%s244 + $0x4] sm:$0xf] %v299
        %s301 = sld [smem:[#allocation3 + $0x2]]
        %s302 = sld [smem:[#allocation4 + $0x2]]
        %v303 = vld [vmem:[%s268] sm:$0x3f]
        %v304 = vstv %s301
        %v305 = vmul.f32 %v303, %v304
        %v306 = vround.ne.pseudo %v305
        %v307 = vmax.f32 %v306, -128.0
        %v308 = vmin.f32 %v307, 127.0
        %v309 = vstv %s302
        %v310 = vmul.f32 %v308, %v309
        %v311 = vround.ne.pseudo %v310
        %v312 = vmax.f32 %v311, -128.0
        %v313 = vmin.f32 %v312, 127.0
        %v314 = vmul.f32 %v313, %v283
        %315 = vst [vmem:[%s244 + $0x8] sm:$0x3f] %v314
        %s316 = sand.u32 %s137, 1
        %s317 = sand.u32 %s137, 1
        %s318 = smul.addr %s317, 16
        %s319 = scalar_lea.vmem [#allocation6], %s318
        // Predicated region
        $region33: #{tpu_custom_call.1} parent=31 // pred_check
          %p320 = pneg %p147
        $region34: #{tpu_custom_call.1} parent=31 // pred_check_branch
          %322 = sbr.rel (%p320) target = $region36
        $region35: #{tpu_custom_call.1} parent=31 // pred_region
          %s323 = smul.addr %s35, 4
          %s324 = sadd.s32 %s36, %s323
          %s325 = smul.addr %s324, 8
          %s326 = scalar_lea.vmem %s6, %s325
          // Predicated region
          $region37: #{tpu_custom_call.1} parent=35 // pred_check
            _
          $region38: #{tpu_custom_call.1} parent=35 // pred_check_branch
            %328 = sbr.rel (0) target = $region40
          $region39: #{tpu_custom_call.1} parent=35 // pred_region
            // Predicated region
            $region41: #{tpu_custom_call.1} parent=39 // pred_check
              _
            $region42: #{tpu_custom_call.1} parent=39 // pred_check_branch
              %330 = sbr.rel (0) target = $region44
            $region43: #{tpu_custom_call.1} parent=39 // pred_region
              // Predicated region
              $region56: #{tpu_custom_call.1} parent=43 // pred_check
                _
              $region57: #{tpu_custom_call.1} parent=43 // pred_check_branch
                %348 = sbr.rel (0) target = $region59
              $region58: #{tpu_custom_call.1} parent=43 // pred_region
                loop: start=0, step=1, limit=1
                $region60: #{tpu_custom_call.1} parent=58 // loop_pre_header
                  _
                $region61: #{tpu_custom_call.1} parent=58 // loop_header
                  %s350 = sphi 0, %s354
                  %p351 = scmp.ge.s32.totalorder %s350, 1
                  %s355 = sphi %s319, %s319
                  %s356 = sphi %s326, %s326
                $region62: #{tpu_custom_call.1} parent=58 // loop_header_branch
                  %353 = sbr.rel (%p351) target = $region66
                $region63: #{tpu_custom_call.1} parent=58 // loop_body
                  %v357 = vld [vmem:[%s355] sm:$0xff]
                  %358 = vst [vmem:[%s356] sm:$0xff] %v357
                  %v359 = vld [vmem:[%s355 + $0x8] sm:$0xff]
                  %360 = vst [vmem:[%s356 + $0x10] sm:$0xff] %v359
                $region64: #{tpu_custom_call.1} parent=58 // loop_footer
                  %s354 = sadd.s32 1, %s350
                $region65: #{tpu_custom_call.1} parent=58 // loop_footer_branch
                  %349 = sbr.rel target = $region61
                $region66: #{tpu_custom_call.1} parent=58 // loop_exit
                  _
              $region59: #{tpu_custom_call.1} parent=43 // pred_fallthru
                _
              // Predicated region
              $region67: #{tpu_custom_call.1} parent=43 // pred_check
                _
              $region68: #{tpu_custom_call.1} parent=43 // pred_check_branch
                %362 = sbr.rel target = $region70
              $region69: #{tpu_custom_call.1} parent=43 // pred_region
                _
              $region70: #{tpu_custom_call.1} parent=43 // pred_fallthru
                _
            $region44: #{tpu_custom_call.1} parent=39 // pred_fallthru
              _
            // Predicated region
            $region45: #{tpu_custom_call.1} parent=39 // pred_check
              _
            $region46: #{tpu_custom_call.1} parent=39 // pred_check_branch
              %332 = sbr.rel target = $region48
            $region47: #{tpu_custom_call.1} parent=39 // pred_region
              %s334 = ssub.s32 256, 1
              loop: start=0, step=1, limit=1
              $region49: #{tpu_custom_call.1} parent=47 // loop_pre_header
                _
              $region50: #{tpu_custom_call.1} parent=47 // loop_header
                %s336 = sphi 0, %s340
                %p337 = scmp.ge.s32.totalorder %s336, 1
                %s341 = sphi %s319, %s319
                %s342 = sphi %s326, %s326
              $region51: #{tpu_custom_call.1} parent=47 // loop_header_branch
                %339 = sbr.rel (%p337) target = $region55
              $region52: #{tpu_custom_call.1} parent=47 // loop_body
                %v343 = vld [vmem:[%s341] sm:%s334]
                %344 = vst [vmem:[%s342] sm:%s334] %v343
                %v345 = vld [vmem:[%s341 + $0x8] sm:%s334]
                %346 = vst [vmem:[%s342 + $0x10] sm:%s334] %v345
              $region53: #{tpu_custom_call.1} parent=47 // loop_footer
                %s340 = sadd.s32 1, %s336
              $region54: #{tpu_custom_call.1} parent=47 // loop_footer_branch
                %335 = sbr.rel target = $region50
              $region55: #{tpu_custom_call.1} parent=47 // loop_exit
                _
            $region48: #{tpu_custom_call.1} parent=39 // pred_fallthru
              _
          $region40: #{tpu_custom_call.1} parent=35 // pred_fallthru
            _
          %363 = vnop
        $region36: #{tpu_custom_call.1} parent=31 // pred_fallthru
          _
      $region32: #{tpu_custom_call.1} parent=5 // pred_fallthru
        _
      %p364 = scmp.le.s32.totalorder 2, %s26
      // Predicated region
      $region71: #{tpu_custom_call.1} parent=5 // pred_check
        %p365 = pneg %p364
      $region72: #{tpu_custom_call.1} parent=5 // pred_check_branch
        %367 = sbr.rel (%p365) target = $region74
      $region73: #{tpu_custom_call.1} parent=5 // pred_region
        %s368 = ssub.s32 %s26, 2
        // Predicated region
        $region75: #{tpu_custom_call.1} parent=73 // pred_check
          %p369 = pneg %p153
        $region76: #{tpu_custom_call.1} parent=73 // pred_check_branch
          %371 = sbr.rel (%p369) target = $region78
        $region77: #{tpu_custom_call.1} parent=73 // pred_region
          %s372 = sand.u32 %s138, 1
          %s373 = sand.u32 %s138, 1
          %s374 = smul.addr %s373, 16
          %s375 = scalar_lea.vmem [#allocation6], %s374
        $region78: #{tpu_custom_call.1} parent=73 // pred_fallthru
          _
      $region74: #{tpu_custom_call.1} parent=5 // pred_fallthru
        _
    $region6: #{tpu_custom_call.1} parent=1 // loop_footer
      %s30 = sadd.s32 1, %s26
    $region7: #{tpu_custom_call.1} parent=1 // loop_footer_branch
      %25 = sbr.rel target = $region3
    $region8: #{tpu_custom_call.1} parent=1 // loop_exit
      _

</llo_original>
